<compile_context>
chip_gen: v6e
topology: v6e:2x2x1
jax: 0.10.0
libtpu: 0.0.40
codegen_flags: <defaults>
</compile_context>

<pallas_src>
import jax
import jax.numpy as jnp
from jax import lax
from jax.experimental import pallas as pl
from jax.experimental.pallas import tpu as pltpu

BN_EPS = 1e-5
LANE = 128
SUBLANE = 8


def _round_up(x, m):
    return ((x + m - 1) // m) * m


# ----------------------------------------------------------------------------
# Pass 1: global average pool over HW + linear layer (per batch tile).
# ----------------------------------------------------------------------------
def _pool_linear_kernel(x_ref, w_ref, feat_ref):
    """x_ref: [TB, HW, C] bf16 (C on the lane axis), w_ref: [C, E_pad] bf16,
    feat_ref: [TB, E_pad] f32 = mean_HW(x) @ W  (bias dropped: cancelled by BN)."""
    TB, HW, C = x_ref.shape
    CH = SUBLANE                      # 8-sublane chunks; bounds the f32 upcast temp
    n_full = HW // CH
    rem = HW - n_full * CH

    acc0 = jnp.zeros((TB, C), jnp.float32)
    if n_full > 0:
        def body(s, acc):
            start = pl.multiple_of(s * CH, CH)
            chunk = x_ref[:, pl.ds(start, CH), :]          # [TB, CH, C] bf16
            return acc + jnp.sum(chunk.astype(jnp.float32), axis=1)
        acc0 = lax.fori_loop(0, n_full, body, acc0, unroll=(n_full <= 8))
    if rem > 0:
        tail = x_ref[:, n_full * CH:HW, :]                 # static tail slice
        acc0 = acc0 + jnp.sum(tail.astype(jnp.float32), axis=1)

    pooled = acc0 * (1.0 / HW)                             # [TB, C] f32
    # MXU: bf16 operands, f32 accumulator.
    feat_ref[...] = jnp.dot(pooled.astype(jnp.bfloat16), w_ref[...],
                            preferred_element_type=jnp.float32)


# ----------------------------------------------------------------------------
# Pass 2: full-batch BatchNorm1d (training-mode forward), padded rows masked.
# ----------------------------------------------------------------------------
def _batchnorm_kernel(n_ref, feat_ref, gamma_ref, beta_ref, out_ref):
    """feat_ref: [B_pad, E_pad] f32; n_ref: SMEM scalar = true batch size B.
    Batch mean / biased variance over the first n rows only."""
    n = n_ref[0]
    inv_n = 1.0 / n.astype(jnp.float32)
    row = lax.broadcasted_iota(jnp.int32, feat_ref.shape, 0)
    maskf = (row < n).astype(jnp.float32)

    feat = feat_ref[...]
    mean = jnp.sum(feat * maskf, axis=0, keepdims=True) * inv_n
    centered = (feat - mean) * maskf
    var = jnp.sum(centered * centered, axis=0, keepdims=True) * inv_n
    inv_std = lax.rsqrt(var + BN_EPS)
    out_ref[...] = gamma_ref[...] * (centered * inv_std) + beta_ref[...]


# ----------------------------------------------------------------------------
# Generation-aware VMEM budgeting and batch-tile selection.
# ----------------------------------------------------------------------------
def _vmem_limits():
    """Returns (vmem_limit_bytes, tile_budget_bytes) for the current TPU gen.
    v7x: 64 MiB/TC -> limit 48 MiB;  v5e/v6e: 128 MiB -> limit 64 MiB."""
    try:
        cap = int(pltpu.get_tpu_info().vmem_capacity_bytes)
    except Exception:
        cap = 64 * 1024 * 1024        # conservative (v7x-sized) fallback
    limit = min((cap * 3) // 4, 64 * 1024 * 1024)
    budget = max(limit - 8 * 1024 * 1024, 16 * 1024 * 1024)  # headroom for scratch
    return limit, budget


def _pick_batch_tile(B, HW, C, E_pad, budget_bytes):
    """Largest TB (multiple of 8) fitting the VMEM budget while keeping >= 2
    grid steps when the batch allows (dual-TC sharding + DMA pipelining)."""
    b_ceil = _round_up(max(B, 1), SUBLANE)
    for tb in (128, 64, 32, 16, 8):
        if tb > b_ceil:
            continue                  # never pad the batch beyond one tile
        if b_ceil > SUBLANE and pl.cdiv(B, tb) < 2:
            continue                  # keep >= 2 grid steps
        need = (2 * tb * HW * C * 2       # double-buffered bf16 input tile
                + 2 * C * E_pad * 2       # double-buffered bf16 weight (const idx)
                + 2 * tb * E_pad * 4      # double-buffered f32 output tile
                + tb * C * 4              # f32 pooled accumulator (loop carry)
                + tb * SUBLANE * C * 4)   # per-chunk f32 upcast temp
        if need <= budget_bytes:
            return tb
    return SUBLANE


# ----------------------------------------------------------------------------
# Wrapper
# ----------------------------------------------------------------------------
def encoder_cnn_forward(feature_map, w, b, gamma, beta, *, batch_tile=None):
    """feature_map: [B, C, H, W] (NCHW) pre-pool ResNet feature map.
       w: [E, C] (PyTorch layout), b/gamma/beta: [E]. Returns [B, E] f32.
       `b` is accepted for API parity but is exactly cancelled by the
       training-mode batch centering, so it never enters the kernels."""
    B, C, H, W_sp = feature_map.shape
    E = w.shape[0]
    HW = H * W_sp

    # Cast BEFORE the layout shuffle so the NCHW->NHWC pass moves bf16, not f32.
    x = feature_map.astype(jnp.bfloat16)
    x = jnp.transpose(x, (0, 2, 3, 1)).reshape(B, HW, C)   # C on the lane axis

    # Pad the embed dim to a lane-dense multiple of 128.
    E_pad = _round_up(E, LANE)
    wt = jnp.zeros((C, E_pad), jnp.bfloat16).at[:, :E].set(w.T.astype(jnp.bfloat16))
    g_p = jnp.ones((1, E_pad), jnp.float32).at[:, :E].set(gamma)
    be_p = jnp.zeros((1, E_pad), jnp.float32).at[:, :E].set(beta)

    vmem_limit, vmem_budget = _vmem_limits()
    if batch_tile is None:
        TB = _pick_batch_tile(B, HW, C, E_pad, vmem_budget)
    else:
        assert batch_tile % SUBLANE == 0, "batch_tile must be a multiple of 8"
        TB = batch_tile

    B_pad = _round_up(B, TB)
    if B_pad != B:
        x = jnp.pad(x, ((0, B_pad - B), (0, 0), (0, 0)))
    num_tiles = B_pad // TB

    # ---- pass 1: pool + linear, batch-tiled, software-pipelined --------------
    feat = pl.pallas_call(
        _pool_linear_kernel,
        out_shape=jax.ShapeDtypeStruct((B_pad, E_pad), jnp.float32),
        grid_spec=pltpu.PrefetchScalarGridSpec(
            num_scalar_prefetch=0,
            grid=(num_tiles,),
            in_specs=[
                pl.BlockSpec((TB, HW, C), lambda i: (i, 0, 0)),
                # Constant index_map: Mosaic does not re-fetch the weight across
                # grid steps; its (double) buffer is counted in the VMEM budget.
                pl.BlockSpec((C, E_pad), lambda i: (0, 0)),
            ],
            out_specs=pl.BlockSpec((TB, E_pad), lambda i: (i, 0)),
        ),
        compiler_params=pltpu.CompilerParams(
            dimension_semantics=("parallel",),     # shards tiles over v7x's 2 TCs
            vmem_limit_bytes=vmem_limit,
        ),
    )(x, wt)

    # ---- pass 2: full-batch BatchNorm1d; padded rows masked in-kernel --------
    n_valid = jnp.array([B], jnp.int32)
    out = pl.pallas_call(
        _batchnorm_kernel,
        out_shape=jax.ShapeDtypeStruct((B_pad, E_pad), jnp.float32),
        grid_spec=pltpu.PrefetchScalarGridSpec(
            num_scalar_prefetch=1,                 # true batch size -> SMEM
            grid=(1,),
            in_specs=[
                pl.BlockSpec((B_pad, E_pad), lambda i, n: (0, 0)),
                pl.BlockSpec((1, E_pad), lambda i, n: (0, 0)),
                pl.BlockSpec((1, E_pad), lambda i, n: (0, 0)),
            ],
            out_specs=pl.BlockSpec((B_pad, E_pad), lambda i, n: (0, 0)),
        ),
        compiler_params=pltpu.CompilerParams(
            dimension_semantics=("arbitrary",)),
    )(n_valid, feat, g_p, be_p)

    return out[:B, :E]


# ----------------------------------------------------------------------------
# References
# ----------------------------------------------------------------------------
def reference_forward_f32(feature_map, w, b, gamma, beta):
    """Pure-JAX full-f32 reference (module semantics, training-mode BN)."""
    B, C, H, W_sp = feature_map.shape
    pooled = feature_map.reshape(B, C, H * W_sp).mean(axis=-1)
    feat = pooled @ w.T + b
    mean = feat.mean(axis=0, keepdims=True)
    var = ((feat - mean) ** 2).mean(axis=0, keepdims=True)
    return gamma * (feat - mean) / jnp.sqrt(var + BN_EPS) + beta


def reference_forward_matched(feature_map, w, b, gamma, beta):
    """Reference following the kernel's precision path (bf16 stream + bf16 MXU)."""
    B, C, H, W_sp = feature_map.shape
    x = feature_map.astype(jnp.bfloat16).astype(jnp.float32)
    pooled = x.reshape(B, C, H * W_sp).mean(axis=-1)
    feat = jnp.dot(pooled.astype(jnp.bfloat16), w.T.astype(jnp.bfloat16),
                   preferred_element_type=jnp.float32) + b
    mean = feat.mean(axis=0, keepdims=True)
    var = ((feat - mean) ** 2).mean(axis=0, keepdims=True)
    return gamma * (feat - mean) / jnp.sqrt(var + BN_EPS) + beta


if __name__ == "__main__":
    # Small shapes consistent with the module (real: C=2048, HW=49, E=256+).
    B = 16                # 2 batch tiles of 8 -> exercises the pipelined grid
    RESNET_OUT = 64       # resnet_out_size (2048 in real ResNet-152)
    H = W = 4             # spatial extent before the adaptive avg-pool
    EMBED = 32            # embed_size

    key = jax.random.PRNGKey(0)
    k_x, k_w = jax.random.split(key)

    # Stand-in for the frozen ResNet-152 pre-pool feature map.
    feature_map = jax.random.normal(k_x, (B, RESNET_OUT, H, W), jnp.float32)

    # Deterministic parameter init matching init_weights():
    w = 0.02 * jax.random.normal(k_w, (EMBED, RESNET_OUT), jnp.float32)  # N(0, 0.02)
    b = jnp.zeros((EMBED,), jnp.float32)
    gamma = jnp.ones((EMBED,), jnp.float32)   # BatchNorm1d default weight
    beta = jnp.zeros((EMBED,), jnp.float32)   # BatchNorm1d default bias

    out = encoder_cnn_forward(feature_map, w, b, gamma, beta)
    out = jax.block_until_ready(out)

    assert out.shape == (B, EMBED)
    ref_m = reference_forward_matched(feature_map, w, b, gamma, beta)
    ref_f = reference_forward_f32(feature_map, w, b, gamma, beta)
    assert jnp.allclose(out, ref_m, atol=5e-3, rtol=5e-3), \
        "mismatch vs precision-matched reference"
    assert jnp.allclose(out, ref_f, atol=5e-2, rtol=5e-2), \
        "mismatch vs f32 reference"

    print("KERNEL_OK")
</pallas_src>

<mosaic_0001>
module attributes {stable_mosaic.version = 11 : i64} {
  func.func @_pool_linear_kernel(%arg0: i32, %arg1: memref<8x16x64xbf16, #tpu.memory_space<vmem>>, %arg2: memref<64x128xbf16, #tpu.memory_space<vmem>>, %arg3: memref<8x128xf32, #tpu.memory_space<vmem>>) attributes {dimension_semantics = [#tpu.dimension_semantics<parallel>], iteration_bounds = array<i64: 2>, scalar_prefetch = 0 : i64, scratch_operands = 0 : i64, tpu.core_type = #tpu.core_type<tc>, window_params = [{transform_indices = @transform_0, window_bounds = array<i64: 8, 16, 64>}, {pipeline_mode = #tpu.pipeline_mode<synchronous>, transform_indices = @transform_1, window_bounds = array<i64: 64, 128>}, {transform_indices = @transform_2, window_bounds = array<i64: 8, 128>}]} {
    %cst = arith.constant 0.000000e+00 : f32
    %0 = vector.broadcast %cst : f32 to vector<8x64xf32>
    %c0_i32 = arith.constant 0 : i32
    %c8_i32 = arith.constant 8 : i32
    %1 = arith.muli %c0_i32, %c8_i32 : i32
    %2 = tpu.assume_multiple %1, 8 : i32
    %c0 = arith.constant 0 : index
    %3 = arith.index_cast %2 : i32 to index
    %c0_0 = arith.constant 0 : index
    %4 = vector.load %arg1[%c0, %3, %c0_0] : memref<8x16x64xbf16, #tpu.memory_space<vmem>>, vector<8x8x64xbf16>
    %5 = arith.extf %4 : vector<8x8x64xbf16> to vector<8x8x64xf32>
    %cst_1 = arith.constant dense<0.000000e+00> : vector<8x64xf32>
    %6 = vector.multi_reduction <add>, %5, %cst_1 [1] : vector<8x8x64xf32> to vector<8x64xf32>
    %7 = arith.addf %0, %6 : vector<8x64xf32>
    %c1_i32 = arith.constant 1 : i32
    %c8_i32_2 = arith.constant 8 : i32
    %8 = arith.muli %c1_i32, %c8_i32_2 : i32
    %9 = tpu.assume_multiple %8, 8 : i32
    %c0_3 = arith.constant 0 : index
    %10 = arith.index_cast %9 : i32 to index
    %c0_4 = arith.constant 0 : index
    %11 = vector.load %arg1[%c0_3, %10, %c0_4] : memref<8x16x64xbf16, #tpu.memory_space<vmem>>, vector<8x8x64xbf16>
    %12 = arith.extf %11 : vector<8x8x64xbf16> to vector<8x8x64xf32>
    %cst_5 = arith.constant dense<0.000000e+00> : vector<8x64xf32>
    %13 = vector.multi_reduction <add>, %12, %cst_5 [1] : vector<8x8x64xf32> to vector<8x64xf32>
    %14 = arith.addf %7, %13 : vector<8x64xf32>
    %c2_i32 = arith.constant 2 : i32
    %cst_6 = arith.constant 6.250000e-02 : f32
    %15 = vector.broadcast %cst_6 : f32 to vector<8x64xf32>
    %16 = arith.mulf %14, %15 : vector<8x64xf32>
    %17 = arith.truncf %16 : vector<8x64xf32> to vector<8x64xbf16>
    %c0_7 = arith.constant 0 : index
    %c0_8 = arith.constant 0 : index
    %18 = vector.load %arg2[%c0_7, %c0_8] : memref<64x128xbf16, #tpu.memory_space<vmem>>, vector<64x128xbf16>
    %cst_9 = arith.constant dense<0.000000e+00> : vector<8x128xf32>
    %19 = tpu.matmul %17, %18, %cst_9 {dimension_numbers = #tpu.dot_dimension_numbers<[1], [0], [0], [1], [0, 0, 1, 1], [], []>} : vector<8x64xbf16>, vector<64x128xbf16>, vector<8x128xf32> -> vector<8x128xf32>
    %c0_10 = arith.constant 0 : index
    %c0_11 = arith.constant 0 : index
    %20 = vector.load %arg3[%c0_10, %c0_11] : memref<8x128xf32, #tpu.memory_space<vmem>>, vector<8x128xf32>
    tpu.vector_store %arg3[%c0_10, %c0_11], %19 {strides = array<i32>} : memref<8x128xf32, #tpu.memory_space<vmem>>, vector<8x128xf32>,
    return
  }
  func.func @transform_0(%arg0: i32) -> (i32, i32, i32) {
    %c0_i32 = arith.constant 0 : i32
    %c0_i32_0 = arith.constant 0 : i32
    %c0_i32_1 = arith.constant 0 : i32
    return %arg0, %c0_i32, %c0_i32_0 : i32, i32, i32
  }
  func.func @transform_1(%arg0: i32) -> (i32, i32) {
    %c0_i32 = arith.constant 0 : i32
    %c0_i32_0 = arith.constant 0 : i32
    %c0_i32_1 = arith.constant 0 : i32
    return %c0_i32, %c0_i32_0 : i32, i32
  }
  func.func @transform_2(%arg0: i32) -> (i32, i32) {
    %c0_i32 = arith.constant 0 : i32
    %c0_i32_0 = arith.constant 0 : i32
    return %arg0, %c0_i32 : i32, i32
  }
}

</mosaic_0001>

<llo_original>
// kernel: tpu_custom_call.1
$region0: #{tpu_custom_call.1}
  #allocation0 [shape = 'u32[]', space=smem, size = 0x4, offset = 0x4, fixed_abs, tag = 'smem constant byte address 0x4 - core index']
  #allocation1 [shape = 'u32[144,128]{1,0:T(1,128)}', space=vmem, size = 0x12000, scoped, tag = 'internal scratch']
  %s0 = inlined_call_operand.hbm [shape: bf16[16,16,64], index: 0, kind: input, shape index: {}]
  %s1 = inlined_call_operand.hbm [shape: bf16[64,128], index: 1, kind: input, shape index: {}]
  %s2 = inlined_call_operand.hbm [shape: f32[16,128], index: 2, kind: output, shape index: {}]
  %s3 = sld [smem:[#allocation0]]
  $region49: #{tpu_custom_call.1} parent=0
    _
  %s5 = ssub.s32 1, %s3
  %s6 = scalar_select 0, %s5, %s3
  $region1: #{tpu_custom_call.1} parent=0
    #allocation2 [shape = 'u8[65536]{0}', space=vmem, size = 0x10000, scoped, tag = 'input window, operand 0']
    #allocation3 [shape = 's32[2]{0}', space=sflag, size = 0x8, scoped, tag = 'scoped memory for tpu_custom_call.1']
    #allocation4 [shape = 's32[2]{0}', space=sflag, size = 0x8, scoped, tag = 'scoped memory for tpu_custom_call.1']
    #allocation5 [shape = 'u8[16384]{0}', space=vmem, size = 0x4000, scoped, tag = 'input window, operand 1, single buffered']
    #allocation6 [shape = 's32[1]{0}', space=sflag, size = 0x4, scoped, tag = 'scoped memory for tpu_custom_call.1']
    #allocation7 [shape = 'u8[8192]{0}', space=vmem, size = 0x2000, scoped, tag = 'output window, operand 0']
    %7 = vsyncpa [#allocation3], 0
    %s8 = scalar_lea.sflag [#allocation3], 1
    %9 = vsyncpa %s8, 0
    %10 = vsyncpa [#allocation6], 0
    %11 = vsyncpa [#allocation4], 0
    %s12 = scalar_lea.sflag [#allocation4], 1
    %13 = vsyncpa %s12, 0
    loop: start=0, step=1, limit=4
    $region2: #{tpu_custom_call.1} parent=1 // loop_pre_header
      _
    $region3: #{tpu_custom_call.1} parent=1 // loop_header
      %s15 = sphi 0, %s19
      %p16 = scmp.ge.s32.totalorder %s15, 4
      %s25 = sphi 0, %s27
      %s28 = sphi 0, %s25
      %s29 = sphi 0, %s28
      %s45 = sphi 0, %s29
      %s49 = sphi 0, %s49
      %s51 = sphi 0, %s49
      %s52 = sphi 0, %s51
      %s66 = sphi 0, %s52
      %s72 = sphi 0, %s74
      %s75 = sphi 0, %s72
      %s76 = sphi 0, %s75
      %s92 = sphi 0, %s76
    $region4: #{tpu_custom_call.1} parent=1 // loop_header_branch
      %18 = sbr.rel (%p16) target = $region8
    $region5: #{tpu_custom_call.1} parent=1 // loop_body
      %s20 = ssub.s32 %s15, 1
      %s21 = ssub.s32 %s15, 2
      %s22 = sadd.s32 %s15, 1
      %s23 = ssub.s32 %s15, %s22
      %p24 = scmp.eq.s32.totalorder %s23, 0
      %s26 = sadd.s32 %s25, 1
      %s27 = scalar_select %p24, %s25, %s26
      %p30 = pneg %p24
      %p31 = scmp.eq.s32.totalorder %s15, 1
      %p32 = por %p30, %p31
      %p33 = scmp.ne.s32.totalorder %s25, %s28
      %p34 = scmp.eq.s32.totalorder %s15, 0
      %p35 = por %p33, %p34
      %p36 = scmp.ne.s32.totalorder %s25, %s28
      %p37 = scmp.eq.s32.totalorder %s20, 1
      %p38 = por %p36, %p37
      %p39 = scmp.ne.s32.totalorder %s28, %s29
      %p40 = scmp.eq.s32.totalorder %s20, 0
      %p41 = por %p39, %p40
      %p42 = scmp.ne.s32.totalorder %s28, %s29
      %p43 = scmp.eq.s32.totalorder %s21, 1
      %p44 = por %p42, %p43
      %p46 = scmp.ne.s32.totalorder %s29, %s45
      %p47 = scmp.eq.s32.totalorder %s21, 0
      %p48 = por %p46, %p47
      %s50 = sadd.s32 %s49, 1
      %p53 = scmp.eq.s32.totalorder %s15, 1
      %p54 = scmp.ne.s32.totalorder %s49, %s51
      %p55 = scmp.eq.s32.totalorder %s15, 0
      %p56 = por %p54, %p55
      %p57 = scmp.ne.s32.totalorder %s49, %s51
      %p58 = scmp.eq.s32.totalorder %s20, 1
      %p59 = por %p57, %p58
      %p60 = scmp.ne.s32.totalorder %s51, %s52
      %p61 = scmp.eq.s32.totalorder %s20, 0
      %p62 = por %p60, %p61
      %p63 = scmp.ne.s32.totalorder %s51, %s52
      %p64 = scmp.eq.s32.totalorder %s21, 1
      %p65 = por %p63, %p64
      %p67 = scmp.ne.s32.totalorder %s52, %s66
      %p68 = scmp.eq.s32.totalorder %s21, 0
      %p69 = por %p67, %p68
      %s70 = ssub.s32 %s15, %s22
      %p71 = scmp.eq.s32.totalorder %s70, 0
      %s73 = sadd.s32 %s72, 1
      %s74 = scalar_select %p71, %s72, %s73
      %p77 = pneg %p71
      %p78 = scmp.eq.s32.totalorder %s15, 1
      %p79 = por %p77, %p78
      %p80 = scmp.ne.s32.totalorder %s72, %s75
      %p81 = scmp.eq.s32.totalorder %s15, 0
      %p82 = por %p80, %p81
      %p83 = scmp.ne.s32.totalorder %s72, %s75
      %p84 = scmp.eq.s32.totalorder %s20, 1
      %p85 = por %p83, %p84
      %p86 = scmp.ne.s32.totalorder %s75, %s76
      %p87 = scmp.eq.s32.totalorder %s20, 0
      %p88 = por %p86, %p87
      %p89 = scmp.ne.s32.totalorder %s75, %s76
      %p90 = scmp.eq.s32.totalorder %s21, 1
      %p91 = por %p89, %p90
      %p93 = scmp.ne.s32.totalorder %s76, %s92
      %p94 = scmp.eq.s32.totalorder %s21, 0
      %p95 = por %p93, %p94
      %p96 = scmp.le.s32.totalorder 1, %s15
      %p97 = scmp.lt.s32.totalorder %s15, 3
      %p98 = pnand %p96, %p97
      %p99 = pneg %p98
      // Predicated region
      $region9: #{tpu_custom_call.1} parent=5 // pred_check
        _
      $region10: #{tpu_custom_call.1} parent=5 // pred_check_branch
        %101 = sbr.rel (%p98) target = $region12
      $region11: #{tpu_custom_call.1} parent=5 // pred_region
        %s102 = ssub.s32 %s15, 1
        // Predicated region
        $region13: #{tpu_custom_call.1} parent=11 // pred_check
          %p103 = pneg %p62
        $region14: #{tpu_custom_call.1} parent=11 // pred_check_branch
          %105 = sbr.rel (%p103) target = $region16
        $region15: #{tpu_custom_call.1} parent=11 // pred_region
          %s107 = ssub.s32 512, 512
          %108 = vsyncadd [#allocation6], %s107
          %s109 = sshll.u32 [#allocation5], 4
          %s110 = int_to_ptr.vmem [resolvable:$true] %s109
          %115 = dma.hbm_to_vmem [thread:$0]  %s1, 512, %s110, [#allocation6], 64, 64, 4
        $region16: #{tpu_custom_call.1} parent=11 // pred_fallthru
          _
      $region12: #{tpu_custom_call.1} parent=5 // pred_fallthru
        _
      %p116 = scmp.lt.s32.totalorder %s15, 2
      // Predicated region
      $region17: #{tpu_custom_call.1} parent=5 // pred_check
        %p117 = pneg %p116
      $region18: #{tpu_custom_call.1} parent=5 // pred_check_branch
        %119 = sbr.rel (%p117) target = $region20
      $region19: #{tpu_custom_call.1} parent=5 // pred_region
        // Predicated region
        $region21: #{tpu_custom_call.1} parent=19 // pred_check
          %p120 = pneg %p35
        $region22: #{tpu_custom_call.1} parent=19 // pred_check_branch
          %122 = sbr.rel (%p120) target = $region24
        $region23: #{tpu_custom_call.1} parent=19 // pred_region
          %s123 = sand.u32 %s25, 1
          %s124 = scalar_lea.sflag [#allocation3], %s123
          %s125 = sand.u32 %s25, 1
          %s126 = smul.addr %s125, 64
          %s127 = scalar_lea.vmem [#allocation2], %s126
          %s128 = smul.u32 8, %s15
          %s130 = ssub.s32 1024, 1024
          %131 = vsyncadd %s124, %s130
          %s132 = smul.addr %s128, 2
          %s133 = smul.addr %s132, 64
          %s134 = scalar_lea.hbm %s0, %s133
          %s135 = sshll.u32 %s127, 4
          %s136 = int_to_ptr.vmem [resolvable:$true] %s135
          %141 = dma.hbm_to_vmem [thread:$0]  %s134, 1024, %s136, %s124, 64, 64, 4
        $region24: #{tpu_custom_call.1} parent=19 // pred_fallthru
          _
      $region20: #{tpu_custom_call.1} parent=5 // pred_fallthru
        _
      %p142 = scmp.le.s32.totalorder 1, %s15
      %p143 = scmp.lt.s32.totalorder %s15, 3
      %p144 = pnand %p142, %p143
      %p145 = pneg %p144
      // Predicated region
      $region25: #{tpu_custom_call.1} parent=5 // pred_check
        _
      $region26: #{tpu_custom_call.1} parent=5 // pred_check_branch
        %147 = sbr.rel (%p144) target = $region28
      $region27: #{tpu_custom_call.1} parent=5 // pred_region
        %s148 = ssub.s32 %s15, 1
        %s149 = sand.u32 %s28, 1
        %s150 = scalar_lea.sflag [#allocation3], %s149
        %s151 = sand.u32 %s28, 1
        %s152 = smul.addr %s151, 64
        %s153 = scalar_lea.vmem [#allocation2], %s152
        // Predicated region
        $region29: #{tpu_custom_call.1} parent=27 // pred_check
          %p154 = pneg %p41
        $region30: #{tpu_custom_call.1} parent=27 // pred_check_branch
          %156 = sbr.rel (%p154) target = $region32
        $region31: #{tpu_custom_call.1} parent=27 // pred_region
          %157 = dma.done %s150, 1024
        $region32: #{tpu_custom_call.1} parent=27 // pred_fallthru
          _
        // Predicated region
        $region33: #{tpu_custom_call.1} parent=27 // pred_check
          %p158 = pneg %p62
        $region34: #{tpu_custom_call.1} parent=27 // pred_check_branch
          %160 = sbr.rel (%p158) target = $region36
        $region35: #{tpu_custom_call.1} parent=27 // pred_region
          %161 = dma.done [#allocation6], 512
        $region36: #{tpu_custom_call.1} parent=27 // pred_fallthru
          _
        %s162 = sand.u32 %s28, 1
        %s163 = scalar_lea.sflag [#allocation3], %s162
        %s164 = sand.u32 %s28, 1
        %s165 = smul.addr %s164, 64
        %s166 = scalar_lea.vmem [#allocation2], %s165
        %p167 = pneg %p41
        %p168 = pneg %p38
        %p169 = pneg %p62
        %p170 = pneg %p59
        %p171 = pneg %p88
        %p172 = pneg %p85
        %s173 = sand.u32 %s75, 1
        %s174 = scalar_lea.sflag [#allocation4], %s173
        %s175 = sand.u32 %s75, 1
        %s176 = smul.addr %s175, 8
        %s177 = scalar_lea.vmem [#allocation7], %s176
        %s178 = smul.u32 8, %s20
        %v180 = vld [vmem:[%s153] sm:$0xf]
        %v181 = vld [vmem:[%s153 + $0x8] sm:$0xf]
        %v182 = vld [vmem:[%s153 + $0x10] sm:$0xf]
        %v183 = vld [vmem:[%s153 + $0x18] sm:$0xf]
        %v184 = vld [vmem:[%s153 + $0x20] sm:$0xf]
        %v185 = vld [vmem:[%s153 + $0x28] sm:$0xf]
        %v186 = vld [vmem:[%s153 + $0x30] sm:$0xf]
        %v187 = vld [vmem:[%s153 + $0x38] sm:$0xf]
        %v188 = vunpack.c.l.bf16 %v180
        %v189 = vunpack.c.l.bf16 %v181
        %v190 = vunpack.c.l.bf16 %v182
        %v191 = vunpack.c.l.bf16 %v183
        %v192 = vunpack.c.l.bf16 %v184
        %v193 = vunpack.c.l.bf16 %v185
        %v194 = vunpack.c.l.bf16 %v186
        %v195 = vunpack.c.l.bf16 %v187
        %vm196 = vcmask 523264
        %v197 = vsel %vm196, %v188, 0.0
        %v198 = vrot.slane %v197, 4
        %v199 = vadd.f32 %v197, %v198
        %v200 = vrot.slane %v199, 2
        %v201 = vadd.f32 %v199, %v200
        %v202 = vrot.slane %v201, 1
        %v203 = vadd.f32 %v201, %v202
        %v204 = vsel %vm196, %v189, 0.0
        %v205 = vrot.slane %v204, 4
        %v206 = vadd.f32 %v204, %v205
        %v207 = vrot.slane %v206, 2
        %v208 = vadd.f32 %v206, %v207
        %v209 = vrot.slane %v208, 1
        %v210 = vadd.f32 %v208, %v209
        %v211 = vsel %vm196, %v190, 0.0
        %v212 = vrot.slane %v211, 4
        %v213 = vadd.f32 %v211, %v212
        %v214 = vrot.slane %v213, 2
        %v215 = vadd.f32 %v213, %v214
        %v216 = vrot.slane %v215, 1
        %v217 = vadd.f32 %v215, %v216
        %v218 = vsel %vm196, %v191, 0.0
        %v219 = vrot.slane %v218, 4
        %v220 = vadd.f32 %v218, %v219
        %v221 = vrot.slane %v220, 2
        %v222 = vadd.f32 %v220, %v221
        %v223 = vrot.slane %v222, 1
        %v224 = vadd.f32 %v222, %v223
        %v225 = vsel %vm196, %v192, 0.0
        %v226 = vrot.slane %v225, 4
        %v227 = vadd.f32 %v225, %v226
        %v228 = vrot.slane %v227, 2
        %v229 = vadd.f32 %v227, %v228
        %v230 = vrot.slane %v229, 1
        %v231 = vadd.f32 %v229, %v230
        %v232 = vsel %vm196, %v193, 0.0
        %v233 = vrot.slane %v232, 4
        %v234 = vadd.f32 %v232, %v233
        %v235 = vrot.slane %v234, 2
        %v236 = vadd.f32 %v234, %v235
        %v237 = vrot.slane %v236, 1
        %v238 = vadd.f32 %v236, %v237
        %v239 = vsel %vm196, %v194, 0.0
        %v240 = vrot.slane %v239, 4
        %v241 = vadd.f32 %v239, %v240
        %v242 = vrot.slane %v241, 2
        %v243 = vadd.f32 %v241, %v242
        %v244 = vrot.slane %v243, 1
        %v245 = vadd.f32 %v243, %v244
        %v246 = vsel %vm196, %v195, 0.0
        %v247 = vrot.slane %v246, 4
        %v248 = vadd.f32 %v246, %v247
        %v249 = vrot.slane %v248, 2
        %v250 = vadd.f32 %v248, %v249
        %v251 = vrot.slane %v250, 1
        %v252 = vadd.f32 %v250, %v251
        %v253 = vadd.f32 %v203, 0.0
        %v254 = vadd.f32 %v210, 0.0
        %v255 = vadd.f32 %v217, 0.0
        %v256 = vadd.f32 %v224, 0.0
        %v257 = vadd.f32 %v231, 0.0
        %v258 = vadd.f32 %v238, 0.0
        %v259 = vadd.f32 %v245, 0.0
        %v260 = vadd.f32 %v252, 0.0
        %s261 = scalar_lea.vmem %s153, 4 [#allocation2]
        %v262 = vld [vmem:[%s261] sm:$0xf]
        %v263 = vld [vmem:[%s261 + $0x8] sm:$0xf]
        %v264 = vld [vmem:[%s261 + $0x10] sm:$0xf]
        %v265 = vld [vmem:[%s261 + $0x18] sm:$0xf]
        %v266 = vld [vmem:[%s261 + $0x20] sm:$0xf]
        %v267 = vld [vmem:[%s261 + $0x28] sm:$0xf]
        %v268 = vld [vmem:[%s261 + $0x30] sm:$0xf]
        %v269 = vld [vmem:[%s261 + $0x38] sm:$0xf]
        %v270 = vunpack.c.l.bf16 %v262
        %v271 = vunpack.c.l.bf16 %v263
        %v272 = vunpack.c.l.bf16 %v264
        %v273 = vunpack.c.l.bf16 %v265
        %v274 = vunpack.c.l.bf16 %v266
        %v275 = vunpack.c.l.bf16 %v267
        %v276 = vunpack.c.l.bf16 %v268
        %v277 = vunpack.c.l.bf16 %v269
        %v278 = vsel %vm196, %v270, 0.0
        %v279 = vrot.slane %v278, 4
        %v280 = vadd.f32 %v278, %v279
        %v281 = vrot.slane %v280, 2
        %v282 = vadd.f32 %v280, %v281
        %v283 = vrot.slane %v282, 1
        %v284 = vadd.f32 %v282, %v283
        %v285 = vsel %vm196, %v271, 0.0
        %v286 = vrot.slane %v285, 4
        %v287 = vadd.f32 %v285, %v286
        %v288 = vrot.slane %v287, 2
        %v289 = vadd.f32 %v287, %v288
        %v290 = vrot.slane %v289, 1
        %v291 = vadd.f32 %v289, %v290
        %v292 = vsel %vm196, %v272, 0.0
        %v293 = vrot.slane %v292, 4
        %v294 = vadd.f32 %v292, %v293
        %v295 = vrot.slane %v294, 2
        %v296 = vadd.f32 %v294, %v295
        %v297 = vrot.slane %v296, 1
        %v298 = vadd.f32 %v296, %v297
        %v299 = vsel %vm196, %v273, 0.0
        %v300 = vrot.slane %v299, 4
        %v301 = vadd.f32 %v299, %v300
        %v302 = vrot.slane %v301, 2
        %v303 = vadd.f32 %v301, %v302
        %v304 = vrot.slane %v303, 1
        %v305 = vadd.f32 %v303, %v304
        %v306 = vsel %vm196, %v274, 0.0
        %v307 = vrot.slane %v306, 4
        %v308 = vadd.f32 %v306, %v307
        %v309 = vrot.slane %v308, 2
        %v310 = vadd.f32 %v308, %v309
        %v311 = vrot.slane %v310, 1
        %v312 = vadd.f32 %v310, %v311
        %v313 = vsel %vm196, %v275, 0.0
        %v314 = vrot.slane %v313, 4
        %v315 = vadd.f32 %v313, %v314
        %v316 = vrot.slane %v315, 2
        %v317 = vadd.f32 %v315, %v316
        %v318 = vrot.slane %v317, 1
        %v319 = vadd.f32 %v317, %v318
        %v320 = vsel %vm196, %v276, 0.0
        %v321 = vrot.slane %v320, 4
        %v322 = vadd.f32 %v320, %v321
        %v323 = vrot.slane %v322, 2
        %v324 = vadd.f32 %v322, %v323
        %v325 = vrot.slane %v324, 1
        %v326 = vadd.f32 %v324, %v325
        %v327 = vsel %vm196, %v277, 0.0
        %v328 = vrot.slane %v327, 4
        %v329 = vadd.f32 %v327, %v328
        %v330 = vrot.slane %v329, 2
        %v331 = vadd.f32 %v329, %v330
        %v332 = vrot.slane %v331, 1
        %v333 = vadd.f32 %v331, %v332
        %v334 = vadd.f32 %v253, %v284
        %v335 = vadd.f32 %v254, %v291
        %v336 = vadd.f32 %v255, %v298
        %v337 = vadd.f32 %v256, %v305
        %v338 = vadd.f32 %v257, %v312
        %v339 = vadd.f32 %v258, %v319
        %v340 = vadd.f32 %v259, %v326
        %v341 = vadd.f32 %v260, %v333
        %v342 = vmul.f32 %v334, 0.0625
        %v343 = vmul.f32 %v335, 0.0625
        %v344 = vmul.f32 %v336, 0.0625
        %v345 = vmul.f32 %v337, 0.0625
        %v346 = vmul.f32 %v338, 0.0625
        %v347 = vmul.f32 %v339, 0.0625
        %v348 = vmul.f32 %v340, 0.0625
        %v349 = vmul.f32 %v341, 0.0625
        %v350 = vpack.c.bf16 %v342, %v342
        %v351 = vpack.c.bf16 %v343, %v343
        %v352 = vpack.c.bf16 %v344, %v344
        %v353 = vpack.c.bf16 %v345, %v345
        %v354 = vpack.c.bf16 %v346, %v346
        %v355 = vpack.c.bf16 %v347, %v347
        %v356 = vpack.c.bf16 %v348, %v348
        %v357 = vpack.c.bf16 %v349, %v349
        %v358 = vld [vmem:[#allocation5] sm:$0xf]
        %v359 = vld [vmem:[#allocation5 + $0x4] sm:$0xf]
        %v360 = vld [vmem:[#allocation5 + $0x8] sm:$0xf]
        %v361 = vld [vmem:[#allocation5 + $0xc] sm:$0xf]
        %v362 = vld [vmem:[#allocation5 + $0x10] sm:$0xf]
        %v363 = vld [vmem:[#allocation5 + $0x14] sm:$0xf]
        %v364 = vld [vmem:[#allocation5 + $0x18] sm:$0xf]
        %v365 = vld [vmem:[#allocation5 + $0x1c] sm:$0xf]
        %v374 = vunpack.c.l.b16 %v350
        %v375 = vunpack.c.l.b16 %v351
        %v376 = vunpack.c.l.b16 %v352
        %v377 = vunpack.c.l.b16 %v353
        %v378 = vunpack.c.l.b16 %v354
        %v379 = vunpack.c.l.b16 %v355
        %v380 = vunpack.c.l.b16 %v356
        %v381 = vunpack.c.l.b16 %v357
        %vm382 = vcmask 1041409
        %v383 = vsel %vm382, %v375, %v374
        %vm384 = vcmask 1042434
        %v385 = vsel %vm384, %v376, %v383
        %vm386 = vcmask 1043459
        %v387 = vsel %vm386, %v377, %v385
        %vm388 = vcmask 1044484
        %v389 = vsel %vm388, %v378, %v387
        %vm390 = vcmask 1045509
        %v391 = vsel %vm390, %v379, %v389
        %vm392 = vcmask 1046534
        %v393 = vsel %vm392, %v380, %v391
        %vm394 = vcmask 1047559
        %v395 = vsel %vm394, %v381, %v393
        %v396 = vpack.c.b16 %v395, %v395
        %v405 = vunpack.c.l.b16 %v358
        %v406 = vunpack.c.l.b16 %v359
        %v407 = vunpack.c.l.b16 %v360
        %v408 = vunpack.c.l.b16 %v361
        %v409 = vunpack.c.l.b16 %v362
        %v410 = vunpack.c.l.b16 %v363
        %v411 = vunpack.c.l.b16 %v364
        %v412 = vunpack.c.l.b16 %v365
        %v413 = vpack.c.b16 %v406, %v405
        %v414 = vpack.c.b16 %v408, %v407
        %v415 = vpack.c.b16 %v410, %v409
        %v416 = vpack.c.b16 %v412, %v411
        %v422 = vsel %vm196, %v396, 0
        %424 = vmatprep.subr.bf16.mxu0 0
        %425 = vmatpush1.bf16.msra.mxu0 0
        %426 = vmatprep.subr.bf16.mxu0 0
        %427 = vmatpush1.bf16.msra.mxu0 0
        %428 = vmatprep.subr.bf16.mxu0 0
        %429 = vmatpush1.bf16.msra.mxu0 0
        %430 = vmatprep.subr.bf16.mxu0 0
        %431 = vmatpush1.bf16.msra.mxu0 0
        %432 = vmatprep.subr.bf16.mxu0 0
        %433 = vmatpush1.bf16.msra.mxu0 %v416
        %434 = vmatprep.subr.bf16.mxu0 0
        %435 = vmatpush1.bf16.msra.mxu0 %v415
        %436 = vmatprep.subr.bf16.mxu0 0
        %437 = vmatpush1.bf16.msra.mxu0 %v414
        %438 = vmatprep.subr.bf16.mxu0 0
        %439 = vmatpush1.bf16.msra.mxu0 %v413
        %440 = vmatprep.subr.bf16.mxu0 0
        %441 = vmatpush2.bf16.msra.mxu0 0
        %442 = vmatprep.subr.bf16.mxu0 0
        %443 = vmatpush2.bf16.msra.mxu0 0
        %444 = vmatprep.subr.bf16.mxu0 0
        %445 = vmatpush2.bf16.msra.mxu0 0
        %446 = vmatprep.subr.bf16.mxu0 0
        %447 = vmatpush2.bf16.msra.mxu0 0
        %448 = vmatprep.subr.bf16.mxu0 0
        %449 = vmatpush2.bf16.msra.mxu0 0
        %450 = vmatprep.subr.bf16.mxu0 0
        %451 = vmatpush2.bf16.msra.mxu0 0
        %452 = vmatprep.subr.bf16.mxu0 0
        %453 = vmatpush2.bf16.msra.mxu0 0
        %454 = vmatprep.subr.bf16.mxu0 0
        %455 = vmatpush2.bf16.msra.mxu0 0
        %456 = vmatprep.mubr.bf16.mxu0 0
        %457 = vmatmul.mubr.bf16.gmra.mxu0 %v422
        %v458 = vpop.f32.mrf.mxu0
        %v459 = vadd.f32 0.0, %v458
        %v460 = vpop.f32.mrf.mxu0
        %v461 = vpop.f32.mrf.mxu0
        %v462 = vpop.f32.mrf.mxu0
        %463 = vdwg.mxu0
        %464 = vst [vmem:[%s177] sm:$0xff] %v459
        %s465 = sand.u32 %s75, 1
        %s466 = scalar_lea.sflag [#allocation4], %s465
        %s467 = sand.u32 %s75, 1
        %s468 = smul.addr %s467, 8
        %s469 = scalar_lea.vmem [#allocation7], %s468
        // Predicated region
        $region37: #{tpu_custom_call.1} parent=27 // pred_check
          %p470 = pneg %p85
        $region38: #{tpu_custom_call.1} parent=27 // pred_check_branch
          %472 = sbr.rel (%p470) target = $region40
        $region39: #{tpu_custom_call.1} parent=27 // pred_region
          %s474 = ssub.s32 128, 128
          %475 = vsyncadd %s466, %s474
          %s476 = smul.addr %s20, 128
          %s477 = scalar_lea.hbm %s2, %s476
          %s479 = sshll.u32 %s469, 4
          %s480 = int_to_ptr.vmem [resolvable:$true] %s479
          %482 = dma.vmem_to_hbm [thread:$0]  %s480, 128, %s477, %s466
        $region40: #{tpu_custom_call.1} parent=27 // pred_fallthru
          _
      $region28: #{tpu_custom_call.1} parent=5 // pred_fallthru
        _
      %p483 = scmp.le.s32.totalorder 2, %s15
      // Predicated region
      $region41: #{tpu_custom_call.1} parent=5 // pred_check
        %p484 = pneg %p483
      $region42: #{tpu_custom_call.1} parent=5 // pred_check_branch
        %486 = sbr.rel (%p484) target = $region44
      $region43: #{tpu_custom_call.1} parent=5 // pred_region
        %s487 = ssub.s32 %s15, 2
        // Predicated region
        $region45: #{tpu_custom_call.1} parent=43 // pred_check
          %p488 = pneg %p91
        $region46: #{tpu_custom_call.1} parent=43 // pred_check_branch
          %490 = sbr.rel (%p488) target = $region48
        $region47: #{tpu_custom_call.1} parent=43 // pred_region
          %s491 = sand.u32 %s76, 1
          %s492 = scalar_lea.sflag [#allocation4], %s491
          %s493 = sand.u32 %s76, 1
          %s494 = smul.addr %s493, 8
          %s495 = scalar_lea.vmem [#allocation7], %s494
          %496 = dma.done %s492, 128
        $region48: #{tpu_custom_call.1} parent=43 // pred_fallthru
          _
      $region44: #{tpu_custom_call.1} parent=5 // pred_fallthru
        _
    $region6: #{tpu_custom_call.1} parent=1 // loop_footer
      %s19 = sadd.s32 1, %s15
    $region7: #{tpu_custom_call.1} parent=1 // loop_footer_branch
      %14 = sbr.rel target = $region3
    $region8: #{tpu_custom_call.1} parent=1 // loop_exit
      _
    %497 = vsyncpa [#allocation3], 1
    %s498 = scalar_lea.sflag [#allocation3], 1
    %499 = vsyncpa %s498, 1
    %500 = vsyncpa [#allocation6], 1
    %501 = vsyncpa [#allocation4], 1
    %s502 = scalar_lea.sflag [#allocation4], 1
    %503 = vsyncpa %s502, 1

</llo_original>
